<compile_context>
chip_gen: v7x
topology: tpu7x:2x2x1
jax: 0.10.0
libtpu: 0.0.40
codegen_flags: <defaults>
</compile_context>

<pallas_src>
from typing import NamedTuple, Optional

import jax
import jax.numpy as jnp
from jax.experimental import pallas as pl
from jax.experimental.pallas import tpu as pltpu


# ----------------------------------------------------------------------------
# Generation-aware defaults
# ----------------------------------------------------------------------------

def _device_kind() -> str:
    try:
        return jax.devices()[0].device_kind.lower()
    except Exception:
        return ""


def _gen_defaults():
    """Per-generation (block_m, block_i, vmem_budget_bytes, kind)."""
    kind = _device_kind()
    if "v5" in kind:
        # v5e knee ~240 bf16 flops/byte -> tm=256 already at balance; spend
        # remaining VMEM (128 MiB physical) on larger ti instead.
        return 256, 512, 96 << 20, kind
    if "v6" in kind:
        # v6e knee ~574 flops/byte -> push the seq tile; 128 MiB VMEM.
        return 512, 512, 96 << 20, kind
    # v7x (64 MiB VMEM per TC) or unknown: conservative budget.
    return 256, 512, 44 << 20, kind


def _round_up(x: int, m: int) -> int:
    return ((x + m - 1) // m) * m


def _resident_bytes(tm: int, ti: int, H: int, w_itemsize: int, x_itemsize: int) -> int:
    """Estimated VMEM resident set for one pipeline stage."""
    weights = 2 * (2 * ti * H + ti * H) * w_itemsize   # fused gate/up + down slabs, double-buffered
    act = 2 * 2 * tm * H * x_itemsize                  # x tile + out tile, double-buffered
    acc = tm * H * 4                                   # f32 accumulator scratch
    return weights + act + acc


# ----------------------------------------------------------------------------
# One-time weight layout (hoisted out of the forward path)
# ----------------------------------------------------------------------------

class PreparedMLPWeights(NamedTuple):
    w_gu_t: jnp.ndarray    # (H, 2*I): block-interleaved [gate_j | up_j] columns per ti-block
    w_down_t: jnp.ndarray  # (I, H)
    ti: int                # intermediate tile the gate/up layout was built for


def prepare_mlp_weights(fused_gate_up_weight: jnp.ndarray,
                        down_weight: jnp.ndarray,
                        *,
                        block_i: Optional[int] = None,
                        vmem_budget: Optional[int] = None) -> PreparedMLPWeights:
    """Transpose + interleave the projection weights into MXU-friendly layouts.

    Call once at weight-load time; mlp_forward then never touches the raw
    (2I, H) / (H, I) tensors (no per-call HBM transpose copies).
    """
    nominal_m, default_bi, default_budget, _ = _gen_defaults()
    block_i = default_bi if block_i is None else block_i
    vmem_budget = default_budget if vmem_budget is None else vmem_budget

    two_i, H = fused_gate_up_weight.shape
    I = two_i // 2
    assert two_i == 2 * I
    assert down_weight.shape == (H, I)

    w_itemsize = jnp.dtype(fused_gate_up_weight.dtype).itemsize

    # Pick ti: prefer full residency (ti == I, weights never re-streamed per
    # seq tile) if it fits; otherwise the largest 128-multiple divisor of I
    # <= block_i that fits the budget.
    def fits(ti_):
        return _resident_bytes(nominal_m, ti_, H, w_itemsize, w_itemsize) <= vmem_budget

    candidates = [I] + sorted(
        {d for d in range(128, I, 128) if I % d == 0 and d <= block_i},
        reverse=True)
    ti = candidates[-1]
    for cand in candidates:
        if fits(cand):
            ti = cand
            break

    wg = fused_gate_up_weight[:I, :]      # (I, H)
    wu = fused_gate_up_weight[I:, :]      # (I, H)
    if ti < I:
        nj = I // ti
        # Block-interleave so fused block j = [gate block j | up block j].
        wgu = jnp.concatenate([wg.reshape(nj, ti, H), wu.reshape(nj, ti, H)],
                              axis=1).reshape(2 * I, H)
    else:
        wgu = jnp.concatenate([wg, wu], axis=0)
    w_gu_t = wgu.T                         # (H, 2*I)
    w_down_t = down_weight.T               # (I, H)
    return PreparedMLPWeights(w_gu_t=w_gu_t, w_down_t=w_down_t, ti=ti)


# ----------------------------------------------------------------------------
# Kernel
# ----------------------------------------------------------------------------

def _mlp_kernel(x_ref, wgu_ref, wd_ref, o_ref, acc_ref):
    # x_ref:   (tm, H)      input dtype (e.g. bf16)
    # wgu_ref: (H, 2*ti)    fused [gate | up] weight slab (pre-transposed)
    # wd_ref:  (ti, H)      down-projection weight slab (pre-transposed)
    # o_ref:   (tm, H)      output tile (resident across the reduction axis)
    # acc_ref: (tm, H)      f32 accumulator scratch
    @pl.when(pl.program_id(1) == 0)
    def _():
        acc_ref[...] = jnp.zeros_like(acc_ref)

    x = x_ref[...]
    # Single fused MXU pass for gate and up (LHS pushed once, N = 2*ti).
    gu = jnp.dot(x, wgu_ref[...], preferred_element_type=jnp.float32)   # (tm, 2*ti)
    ti = gu.shape[1] // 2
    gate = gu[:, :ti]
    up = gu[:, ti:]

    # SiLU(gate) * up in f32.  exp and the approx reciprocal both run on the
    # EUP slot (idle next to the MXU); the exponent is clamped so exp never
    # produces inf (keeps the approx reciprocal well-defined).
    gate_c = jnp.maximum(gate, -30.0)
    sig = pl.reciprocal(1.0 + jnp.exp(-gate_c), approx=True)
    h = gate * sig * up

    # Partial down projection for this intermediate slab, accumulated in f32.
    # h is cast back to the input dtype to match silu_bf16xbf16 semantics.
    acc_ref[...] += jnp.dot(h.astype(x_ref.dtype), wd_ref[...],
                            preferred_element_type=jnp.float32)

    @pl.when(pl.program_id(1) == pl.num_programs(1) - 1)
    def _():
        o_ref[...] = acc_ref[...].astype(o_ref.dtype)


# ----------------------------------------------------------------------------
# Forward wrapper
# ----------------------------------------------------------------------------

def mlp_forward(hidden_states: jnp.ndarray,
                prepared: PreparedMLPWeights,
                *,
                block_m: Optional[int] = None,
                vmem_budget: Optional[int] = None) -> jnp.ndarray:
    """Forward pass of the Qwen3 MLP module. Supports (..., H) inputs."""
    default_bm, _, default_budget, kind = _gen_defaults()
    block_m = default_bm if block_m is None else block_m
    vmem_budget = default_budget if vmem_budget is None else vmem_budget

    orig_shape = hidden_states.shape
    H = orig_shape[-1]
    x = hidden_states.reshape(-1, H)
    S = x.shape[0]

    ti = prepared.ti
    I = prepared.w_down_t.shape[0]
    assert prepared.w_gu_t.shape == (H, 2 * I)
    assert I % ti == 0

    w_itemsize = jnp.dtype(prepared.w_gu_t.dtype).itemsize
    x_itemsize = jnp.dtype(x.dtype).itemsize

    # Seq tile: largest multiple of 8 <= block_m that fits the VMEM budget.
    tm = min(block_m, _round_up(S, 8))
    while tm > 8 and _resident_bytes(tm, ti, H, w_itemsize, x_itemsize) > vmem_budget:
        tm = max(8, _round_up(tm // 2, 8))

    # v7x megacore: ensure the "parallel" seq axis has >= 2 tiles so both
    # TensorCores get work.
    if ("v7" in kind or "7x" in kind) and S >= 16 and tm >= 16 and _round_up(S, tm) // tm < 2:
        tm = max(8, _round_up(tm // 2, 8))

    S_pad = _round_up(S, tm)
    if S_pad != S:
        x = jnp.pad(x, ((0, S_pad - S), (0, 0)))

    grid = (S_pad // tm, I // ti)

    vmem_limit = int(min(
        128 << 20,
        max(32 << 20,
            int(1.25 * _resident_bytes(tm, ti, H, w_itemsize, x_itemsize)) + (4 << 20))))

    out = pl.pallas_call(
        _mlp_kernel,
        out_shape=jax.ShapeDtypeStruct((S_pad, H), x.dtype),
        grid_spec=pltpu.PrefetchScalarGridSpec(
            num_scalar_prefetch=0,
            grid=grid,
            in_specs=[
                pl.BlockSpec((tm, H), lambda i, j: (i, 0)),       # x tile
                pl.BlockSpec((H, 2 * ti), lambda i, j: (0, j)),   # fused gate/up slab
                pl.BlockSpec((ti, H), lambda i, j: (j, 0)),       # down slab
            ],
            out_specs=pl.BlockSpec((tm, H), lambda i, j: (i, 0)),
            scratch_shapes=[pltpu.VMEM((tm, H), jnp.float32)],
        ),
        compiler_params=pltpu.CompilerParams(
            dimension_semantics=("parallel", "arbitrary"),
            vmem_limit_bytes=vmem_limit),
    )(x, prepared.w_gu_t, prepared.w_down_t)

    if S_pad != S:
        out = out[:S]
    return out.reshape(orig_shape)


# ----------------------------------------------------------------------------
# Self-test
# ----------------------------------------------------------------------------

if __name__ == "__main__":
    seq = 8
    hidden_size = 128
    intermediate_size = 256

    key = jax.random.PRNGKey(0)
    kx, kg, kd = jax.random.split(key, 3)

    x = jax.random.normal(kx, (seq, hidden_size), dtype=jnp.float32).astype(jnp.bfloat16)
    fused_gate_up_weight = (
        jax.random.normal(kg, (2 * intermediate_size, hidden_size), dtype=jnp.float32) * 0.05
    ).astype(jnp.bfloat16)
    down_weight = (
        jax.random.normal(kd, (hidden_size, intermediate_size), dtype=jnp.float32) * 0.05
    ).astype(jnp.bfloat16)

    # One-time weight layout (hoisted out of the forward path).
    prepared = prepare_mlp_weights(fused_gate_up_weight, down_weight)

    out = mlp_forward(x, prepared)
    jax.block_until_ready(out)

    # Pure-JAX reference (same semantics as the torch forward):
    #   x @ W_gu.T -> silu_and_mul -> @ W_d.T, with the gated activation cast
    #   back to bf16 before the down projection (silu_bf16xbf16 semantics).
    xf = x.astype(jnp.float32)
    wgu = fused_gate_up_weight.astype(jnp.float32)
    wd = down_weight.astype(jnp.float32)
    gu = xf @ wgu.T
    gate, up = gu[:, :intermediate_size], gu[:, intermediate_size:]
    h_ref = (jax.nn.silu(gate) * up).astype(jnp.bfloat16).astype(jnp.float32)
    out_ref = (h_ref @ wd.T).astype(jnp.bfloat16)

    assert out.shape == (seq, hidden_size) and out.dtype == jnp.bfloat16
    err = jnp.max(jnp.abs(out.astype(jnp.float32) - out_ref.astype(jnp.float32)))
    scale = jnp.max(jnp.abs(out_ref.astype(jnp.float32))) + 1e-6
    assert float(err / scale) < 2e-2, f"relative error too large: {float(err / scale)}"

    print("KERNEL_OK")
</pallas_src>

<mosaic_0001>
module attributes {stable_mosaic.version = 11 : i64} {
  func.func @_mlp_kernel(%arg0: i32, %arg1: i32, %arg2: memref<8x128xbf16, #tpu.memory_space<vmem>>, %arg3: memref<128x512xbf16, #tpu.memory_space<vmem>>, %arg4: memref<256x128xbf16, #tpu.memory_space<vmem>>, %arg5: memref<8x128xbf16, #tpu.memory_space<vmem>>, %arg6: memref<8x128xf32, #tpu.memory_space<vmem>>) attributes {dimension_semantics = [#tpu.dimension_semantics<parallel>, #tpu.dimension_semantics<arbitrary>], iteration_bounds = array<i64: 1, 1>, scalar_prefetch = 0 : i64, scratch_operands = 1 : i64, tpu.core_type = #tpu.core_type<tc>, window_params = [{transform_indices = @transform_0, window_bounds = array<i64: 8, 128>}, {transform_indices = @transform_1, window_bounds = array<i64: 128, 512>}, {transform_indices = @transform_2, window_bounds = array<i64: 256, 128>}, {transform_indices = @transform_3, window_bounds = array<i64: 8, 128>}]} {
    %c0_i32 = arith.constant 0 : i32
    %0 = arith.cmpi eq, %arg1, %c0_i32 : i32
    %1 = arith.extui %0 : i1 to i32
    %c0_i32_0 = arith.constant 0 : i32
    %2 = arith.cmpi ne, %1, %c0_i32_0 : i32
    scf.if %2 {
      %cst_16 = arith.constant 0.000000e+00 : f32
      %27 = vector.broadcast %cst_16 : f32 to vector<8x128xf32>
      %c0_17 = arith.constant 0 : index
      %c0_18 = arith.constant 0 : index
      %28 = vector.load %arg6[%c0_17, %c0_18] : memref<8x128xf32, #tpu.memory_space<vmem>>, vector<8x128xf32>
      tpu.vector_store %arg6[%c0_17, %c0_18], %27 {strides = array<i32>} : memref<8x128xf32, #tpu.memory_space<vmem>>, vector<8x128xf32>,
    } else {
    }
    %c0 = arith.constant 0 : index
    %c0_1 = arith.constant 0 : index
    %3 = vector.load %arg2[%c0, %c0_1] : memref<8x128xbf16, #tpu.memory_space<vmem>>, vector<8x128xbf16>
    %c0_2 = arith.constant 0 : index
    %c0_3 = arith.constant 0 : index
    %4 = vector.load %arg3[%c0_2, %c0_3] : memref<128x512xbf16, #tpu.memory_space<vmem>>, vector<128x512xbf16>
    %cst = arith.constant dense<0.000000e+00> : vector<8x512xf32>
    %5 = tpu.matmul %3, %4, %cst {dimension_numbers = #tpu.dot_dimension_numbers<[1], [0], [0], [1], [0, 0, 1, 1], [], []>} : vector<8x128xbf16>, vector<128x512xbf16>, vector<8x512xf32> -> vector<8x512xf32>
    %6 = vector.extract_strided_slice %5 {offsets = [0, 0], sizes = [8, 256], strides = [1, 1]} : vector<8x512xf32> to vector<8x256xf32>
    %7 = vector.extract_strided_slice %5 {offsets = [0, 256], sizes = [8, 256], strides = [1, 1]} : vector<8x512xf32> to vector<8x256xf32>
    %cst_4 = arith.constant -3.000000e+01 : f32
    %8 = vector.broadcast %cst_4 : f32 to vector<8x256xf32>
    %9 = arith.maximumf %6, %8 : vector<8x256xf32>
    %cst_5 = arith.constant 0.000000e+00 : f32
    %10 = vector.broadcast %cst_5 : f32 to vector<8x256xf32>
    %11 = arith.subf %10, %9 : vector<8x256xf32>
    %12 = math.exp %11 : vector<8x256xf32>
    %cst_6 = arith.constant 1.000000e+00 : f32
    %13 = vector.broadcast %cst_6 : f32 to vector<8x256xf32>
    %14 = arith.addf %13, %12 : vector<8x256xf32>
    %15 = tpu.reciprocal %14 {approx = true} : vector<8x256xf32> -> vector<8x256xf32>
    %16 = arith.mulf %6, %15 : vector<8x256xf32>
    %17 = arith.mulf %16, %7 : vector<8x256xf32>
    %c0_7 = arith.constant 0 : index
    %c0_8 = arith.constant 0 : index
    %18 = vector.load %arg6[%c0_7, %c0_8] : memref<8x128xf32, #tpu.memory_space<vmem>>, vector<8x128xf32>
    %19 = arith.truncf %17 : vector<8x256xf32> to vector<8x256xbf16>
    %c0_9 = arith.constant 0 : index
    %c0_10 = arith.constant 0 : index
    %20 = vector.load %arg4[%c0_9, %c0_10] : memref<256x128xbf16, #tpu.memory_space<vmem>>, vector<256x128xbf16>
    %cst_11 = arith.constant dense<0.000000e+00> : vector<8x128xf32>
    %21 = tpu.matmul %19, %20, %cst_11 {dimension_numbers = #tpu.dot_dimension_numbers<[1], [0], [0], [1], [0, 0, 1, 1], [], []>} : vector<8x256xbf16>, vector<256x128xbf16>, vector<8x128xf32> -> vector<8x128xf32>
    %22 = arith.addf %18, %21 : vector<8x128xf32>
    %c0_12 = arith.constant 0 : index
    %c0_13 = arith.constant 0 : index
    %23 = vector.load %arg6[%c0_12, %c0_13] : memref<8x128xf32, #tpu.memory_space<vmem>>, vector<8x128xf32>
    tpu.vector_store %arg6[%c0_12, %c0_13], %22 {strides = array<i32>} : memref<8x128xf32, #tpu.memory_space<vmem>>, vector<8x128xf32>,
    %c0_i32_14 = arith.constant 0 : i32
    %24 = arith.cmpi eq, %arg1, %c0_i32_14 : i32
    %25 = arith.extui %24 : i1 to i32
    %c0_i32_15 = arith.constant 0 : i32
    %26 = arith.cmpi ne, %25, %c0_i32_15 : i32
    scf.if %26 {
      %c0_16 = arith.constant 0 : index
      %c0_17 = arith.constant 0 : index
      %27 = vector.load %arg6[%c0_16, %c0_17] : memref<8x128xf32, #tpu.memory_space<vmem>>, vector<8x128xf32>
      %28 = arith.truncf %27 : vector<8x128xf32> to vector<8x128xbf16>
      %c0_18 = arith.constant 0 : index
      %c0_19 = arith.constant 0 : index
      %29 = vector.load %arg5[%c0_18, %c0_19] : memref<8x128xbf16, #tpu.memory_space<vmem>>, vector<8x128xbf16>
      tpu.vector_store %arg5[%c0_18, %c0_19], %28 {strides = array<i32>} : memref<8x128xbf16, #tpu.memory_space<vmem>>, vector<8x128xbf16>,
    } else {
    }
    return
  }
  func.func @transform_0(%arg0: i32, %arg1: i32) -> (i32, i32) {
    %c0_i32 = arith.constant 0 : i32
    %c0_i32_0 = arith.constant 0 : i32
    return %arg0, %c0_i32 : i32, i32
  }
  func.func @transform_1(%arg0: i32, %arg1: i32) -> (i32, i32) {
    %c0_i32 = arith.constant 0 : i32
    %c0_i32_0 = arith.constant 0 : i32
    return %c0_i32, %arg1 : i32, i32
  }
  func.func @transform_2(%arg0: i32, %arg1: i32) -> (i32, i32) {
    %c0_i32 = arith.constant 0 : i32
    %c0_i32_0 = arith.constant 0 : i32
    return %arg1, %c0_i32 : i32, i32
  }
  func.func @transform_3(%arg0: i32, %arg1: i32) -> (i32, i32) {
    %c0_i32 = arith.constant 0 : i32
    %c0_i32_0 = arith.constant 0 : i32
    return %arg0, %c0_i32 : i32, i32
  }
}

</mosaic_0001>

<llo_original>
// kernel: tpu_custom_call.1
$region0: #{tpu_custom_call.1}
  #allocation0 [shape = 'u32[]', space=smem, size = 0x4, offset = 0x4, fixed_abs, tag = 'smem constant byte address 0x4 - core index']
  #allocation1 [shape = 'u32[144,128]{1,0:T(1,128)}', space=vmem, size = 0x12000, scoped, tag = 'internal scratch']
  #allocation2 [shape = 'f32[8,128]{1,0:T(8,128)}', space=vmem, size = 0x1000, scoped, tag = 'scratch operand']
  %s0 = inlined_call_operand.hbm [shape: bf16[8,128], index: 0, kind: input, shape index: {}]
  %s1 = inlined_call_operand.hbm [shape: bf16[128,512], index: 1, kind: input, shape index: {}]
  %s2 = inlined_call_operand.hbm [shape: bf16[256,128], index: 2, kind: input, shape index: {}]
  %s3 = inlined_call_operand.hbm [shape: bf16[8,128], index: 3, kind: output, shape index: {}]
  %s4 = sld [smem:[#allocation0]]
  $region42: #{tpu_custom_call.1} parent=0
    _
  %s6 = ssub.s32 1, %s4
  %s7 = scalar_select 0, %s6, %s4
  $region1: #{tpu_custom_call.1} parent=0
    #allocation3 [shape = 'u8[2048]{0}', space=vmem, size = 0x800, scoped, tag = 'input window, operand 0, single buffered']
    #allocation4 [shape = 's32[1]{0}', space=sflag, size = 0x4, scoped, tag = 'scoped memory for tpu_custom_call.1']
    #allocation5 [shape = 's32[1]{0}', space=sflag, size = 0x4, scoped, tag = 'scoped memory for tpu_custom_call.1']
    #allocation6 [shape = 'u8[131072]{0}', space=vmem, size = 0x20000, scoped, tag = 'input window, operand 1, single buffered']
    #allocation7 [shape = 's32[1]{0}', space=sflag, size = 0x4, scoped, tag = 'scoped memory for tpu_custom_call.1']
    #allocation8 [shape = 'u8[65536]{0}', space=vmem, size = 0x10000, scoped, tag = 'input window, operand 2, single buffered']
    #allocation9 [shape = 'u8[2048]{0}', space=vmem, size = 0x800, scoped, tag = 'output window, operand 0, single buffered']
    %8 = vsyncpa [#allocation4], 0
    %9 = vsyncpa [#allocation7], 0
    %10 = vsyncpa [#allocation5], 0
    // Predicated region
    $region2: #{tpu_custom_call.1} parent=1 // pred_check
      _
    $region3: #{tpu_custom_call.1} parent=1 // pred_check_branch
      %12 = sbr.rel (0) target = $region5
    $region4: #{tpu_custom_call.1} parent=1 // pred_region
      %s14 = ssub.s32 64, 64
      %15 = vsyncadd [#allocation4], %s14
      %s17 = sshll.u32 [#allocation3], 4
      %s18 = int_to_ptr.vmem [resolvable:$true] %s17
      %20 = dma.hbm_to_vmem [thread:$0]  %s0, 64, %s18, [#allocation4]
    $region5: #{tpu_custom_call.1} parent=1 // pred_fallthru
      _
    // Predicated region
    $region6: #{tpu_custom_call.1} parent=1 // pred_check
      _
    $region7: #{tpu_custom_call.1} parent=1 // pred_check_branch
      %22 = sbr.rel (0) target = $region9
    $region8: #{tpu_custom_call.1} parent=1 // pred_region
      %s24 = ssub.s32 4096, 4096
      %25 = vsyncadd [#allocation7], %s24
      %s26 = sshll.u32 [#allocation6], 4
      %s27 = int_to_ptr.vmem [resolvable:$true] %s26
      %32 = dma.hbm_to_vmem [thread:$0]  %s1, 4096, %s27, [#allocation7], 256, 256, 16
    $region9: #{tpu_custom_call.1} parent=1 // pred_fallthru
      _
    // Predicated region
    $region10: #{tpu_custom_call.1} parent=1 // pred_check
      _
    $region11: #{tpu_custom_call.1} parent=1 // pred_check_branch
      %34 = sbr.rel (0) target = $region13
    $region12: #{tpu_custom_call.1} parent=1 // pred_region
      %s36 = ssub.s32 2048, 2048
      %37 = vsyncadd [#allocation7], %s36
      %s38 = sshll.u32 [#allocation8], 4
      %s39 = int_to_ptr.vmem [resolvable:$true] %s38
      %44 = dma.hbm_to_vmem [thread:$0]  %s2, 2048, %s39, [#allocation7], 64, 64, 4
    $region13: #{tpu_custom_call.1} parent=1 // pred_fallthru
      _
    // Predicated region
    $region14: #{tpu_custom_call.1} parent=1 // pred_check
      _
    $region15: #{tpu_custom_call.1} parent=1 // pred_check_branch
      %46 = sbr.rel (0) target = $region17
    $region16: #{tpu_custom_call.1} parent=1 // pred_region
      %47 = dma.done [#allocation4], 64
    $region17: #{tpu_custom_call.1} parent=1 // pred_fallthru
      _
    // Predicated region
    $region18: #{tpu_custom_call.1} parent=1 // pred_check
      _
    $region19: #{tpu_custom_call.1} parent=1 // pred_check_branch
      %49 = sbr.rel (0) target = $region21
    $region20: #{tpu_custom_call.1} parent=1 // pred_region
      %50 = dma.done [#allocation7], 4096
    $region21: #{tpu_custom_call.1} parent=1 // pred_fallthru
      _
    // Predicated region
    $region22: #{tpu_custom_call.1} parent=1 // pred_check
      _
    $region23: #{tpu_custom_call.1} parent=1 // pred_check_branch
      %52 = sbr.rel (0) target = $region25
    $region24: #{tpu_custom_call.1} parent=1 // pred_region
      %53 = dma.done [#allocation7], 2048
    $region25: #{tpu_custom_call.1} parent=1 // pred_fallthru
      _
    %p55 = scmp.eq.s32.totalorder 0, 0
    // Predicated region
    $region26: #{tpu_custom_call.1} parent=1 // pred_check
      %p56 = pneg %p55
    $region27: #{tpu_custom_call.1} parent=1 // pred_check_branch
      %58 = sbr.rel (%p56) target = $region29
    $region28: #{tpu_custom_call.1} parent=1 // pred_region
      %59 = vst [vmem:[#allocation2] sm:$0xff] 0.0
    $region29: #{tpu_custom_call.1} parent=1 // pred_fallthru
      _
    %v60 = vld [vmem:[#allocation3] sm:$0xf]
    %v61 = vld [vmem:[#allocation6] sm:$0xff]
    %v62 = vld [vmem:[#allocation6 + $0x8] sm:$0xff]
    %v63 = vld [vmem:[#allocation6 + $0x10] sm:$0xff]
    %v64 = vld [vmem:[#allocation6 + $0x18] sm:$0xff]
    %v65 = vld [vmem:[#allocation6 + $0x20] sm:$0xff]
    %v66 = vld [vmem:[#allocation6 + $0x28] sm:$0xff]
    %v67 = vld [vmem:[#allocation6 + $0x30] sm:$0xff]
    %v68 = vld [vmem:[#allocation6 + $0x38] sm:$0xff]
    %v69 = vld [vmem:[#allocation6 + $0x40] sm:$0xff]
    %v70 = vld [vmem:[#allocation6 + $0x48] sm:$0xff]
    %v71 = vld [vmem:[#allocation6 + $0x50] sm:$0xff]
    %v72 = vld [vmem:[#allocation6 + $0x58] sm:$0xff]
    %v73 = vld [vmem:[#allocation6 + $0x60] sm:$0xff]
    %v74 = vld [vmem:[#allocation6 + $0x68] sm:$0xff]
    %v75 = vld [vmem:[#allocation6 + $0x70] sm:$0xff]
    %v76 = vld [vmem:[#allocation6 + $0x78] sm:$0xff]
    %v77 = vld [vmem:[#allocation6 + $0x80] sm:$0xff]
    %v78 = vld [vmem:[#allocation6 + $0x88] sm:$0xff]
    %v79 = vld [vmem:[#allocation6 + $0x90] sm:$0xff]
    %v80 = vld [vmem:[#allocation6 + $0x98] sm:$0xff]
    %v81 = vld [vmem:[#allocation6 + $0xa0] sm:$0xff]
    %v82 = vld [vmem:[#allocation6 + $0xa8] sm:$0xff]
    %v83 = vld [vmem:[#allocation6 + $0xb0] sm:$0xff]
    %v84 = vld [vmem:[#allocation6 + $0xb8] sm:$0xff]
    %v85 = vld [vmem:[#allocation6 + $0xc0] sm:$0xff]
    %v86 = vld [vmem:[#allocation6 + $0xc8] sm:$0xff]
    %v87 = vld [vmem:[#allocation6 + $0xd0] sm:$0xff]
    %v88 = vld [vmem:[#allocation6 + $0xd8] sm:$0xff]
    %v89 = vld [vmem:[#allocation6 + $0xe0] sm:$0xff]
    %v90 = vld [vmem:[#allocation6 + $0xe8] sm:$0xff]
    %v91 = vld [vmem:[#allocation6 + $0xf0] sm:$0xff]
    %v92 = vld [vmem:[#allocation6 + $0xf8] sm:$0xff]
    %v125 = vunpack.c.l.b16 %v61
    %v126 = vunpack.c.h.b16 %v61
    %v127 = vunpack.c.l.b16 %v62
    %v128 = vunpack.c.h.b16 %v62
    %v129 = vunpack.c.l.b16 %v63
    %v130 = vunpack.c.h.b16 %v63
    %v131 = vunpack.c.l.b16 %v64
    %v132 = vunpack.c.h.b16 %v64
    %v133 = vunpack.c.l.b16 %v65
    %v134 = vunpack.c.h.b16 %v65
    %v135 = vunpack.c.l.b16 %v66
    %v136 = vunpack.c.h.b16 %v66
    %v137 = vunpack.c.l.b16 %v67
    %v138 = vunpack.c.h.b16 %v67
    %v139 = vunpack.c.l.b16 %v68
    %v140 = vunpack.c.h.b16 %v68
    %v141 = vunpack.c.l.b16 %v69
    %v142 = vunpack.c.h.b16 %v69
    %v143 = vunpack.c.l.b16 %v70
    %v144 = vunpack.c.h.b16 %v70
    %v145 = vunpack.c.l.b16 %v71
    %v146 = vunpack.c.h.b16 %v71
    %v147 = vunpack.c.l.b16 %v72
    %v148 = vunpack.c.h.b16 %v72
    %v149 = vunpack.c.l.b16 %v73
    %v150 = vunpack.c.h.b16 %v73
    %v151 = vunpack.c.l.b16 %v74
    %v152 = vunpack.c.h.b16 %v74
    %v153 = vunpack.c.l.b16 %v75
    %v154 = vunpack.c.h.b16 %v75
    %v155 = vunpack.c.l.b16 %v76
    %v156 = vunpack.c.h.b16 %v76
    %v157 = vunpack.c.l.b16 %v77
    %v158 = vunpack.c.h.b16 %v77
    %v159 = vunpack.c.l.b16 %v78
    %v160 = vunpack.c.h.b16 %v78
    %v161 = vunpack.c.l.b16 %v79
    %v162 = vunpack.c.h.b16 %v79
    %v163 = vunpack.c.l.b16 %v80
    %v164 = vunpack.c.h.b16 %v80
    %v165 = vunpack.c.l.b16 %v81
    %v166 = vunpack.c.h.b16 %v81
    %v167 = vunpack.c.l.b16 %v82
    %v168 = vunpack.c.h.b16 %v82
    %v169 = vunpack.c.l.b16 %v83
    %v170 = vunpack.c.h.b16 %v83
    %v171 = vunpack.c.l.b16 %v84
    %v172 = vunpack.c.h.b16 %v84
    %v173 = vunpack.c.l.b16 %v85
    %v174 = vunpack.c.h.b16 %v85
    %v175 = vunpack.c.l.b16 %v86
    %v176 = vunpack.c.h.b16 %v86
    %v177 = vunpack.c.l.b16 %v87
    %v178 = vunpack.c.h.b16 %v87
    %v179 = vunpack.c.l.b16 %v88
    %v180 = vunpack.c.h.b16 %v88
    %v181 = vunpack.c.l.b16 %v89
    %v182 = vunpack.c.h.b16 %v89
    %v183 = vunpack.c.l.b16 %v90
    %v184 = vunpack.c.h.b16 %v90
    %v185 = vunpack.c.l.b16 %v91
    %v186 = vunpack.c.h.b16 %v91
    %v187 = vunpack.c.l.b16 %v92
    %v188 = vunpack.c.h.b16 %v92
    %v189 = vpack.c.b16 %v129, %v125
    %v190 = vpack.c.b16 %v130, %v126
    %v191 = vpack.c.b16 %v131, %v127
    %v192 = vpack.c.b16 %v132, %v128
    %v193 = vpack.c.b16 %v137, %v133
    %v194 = vpack.c.b16 %v138, %v134
    %v195 = vpack.c.b16 %v139, %v135
    %v196 = vpack.c.b16 %v140, %v136
    %v197 = vpack.c.b16 %v145, %v141
    %v198 = vpack.c.b16 %v146, %v142
    %v199 = vpack.c.b16 %v147, %v143
    %v200 = vpack.c.b16 %v148, %v144
    %v201 = vpack.c.b16 %v153, %v149
    %v202 = vpack.c.b16 %v154, %v150
    %v203 = vpack.c.b16 %v155, %v151
    %v204 = vpack.c.b16 %v156, %v152
    %v205 = vpack.c.b16 %v161, %v157
    %v206 = vpack.c.b16 %v162, %v158
    %v207 = vpack.c.b16 %v163, %v159
    %v208 = vpack.c.b16 %v164, %v160
    %v209 = vpack.c.b16 %v169, %v165
    %v210 = vpack.c.b16 %v170, %v166
    %v211 = vpack.c.b16 %v171, %v167
    %v212 = vpack.c.b16 %v172, %v168
    %v213 = vpack.c.b16 %v177, %v173
    %v214 = vpack.c.b16 %v178, %v174
    %v215 = vpack.c.b16 %v179, %v175
    %v216 = vpack.c.b16 %v180, %v176
    %v217 = vpack.c.b16 %v185, %v181
    %v218 = vpack.c.b16 %v186, %v182
    %v219 = vpack.c.b16 %v187, %v183
    %v220 = vpack.c.b16 %v188, %v184
    %253 = vmatprep.subr.bf16.mxu0 %v190
    %254 = vmatpush1.bf16.msra.mxu0 %v189
    %255 = vmatprep.subr.bf16.mxu0 %v194
    %256 = vmatpush1.bf16.msra.mxu0 %v193
    %257 = vmatprep.subr.bf16.mxu0 %v198
    %258 = vmatpush1.bf16.msra.mxu0 %v197
    %259 = vmatprep.subr.bf16.mxu0 %v202
    %260 = vmatpush1.bf16.msra.mxu0 %v201
    %261 = vmatprep.subr.bf16.mxu0 %v206
    %262 = vmatpush1.bf16.msra.mxu0 %v205
    %263 = vmatprep.subr.bf16.mxu0 %v210
    %264 = vmatpush1.bf16.msra.mxu0 %v209
    %265 = vmatprep.subr.bf16.mxu0 %v214
    %266 = vmatpush1.bf16.msra.mxu0 %v213
    %267 = vmatprep.subr.bf16.mxu0 %v218
    %268 = vmatpush1.bf16.msra.mxu0 %v217
    %269 = vmatprep.subr.bf16.mxu0 0
    %270 = vmatpush1.bf16.msra.mxu0 0
    %271 = vmatprep.subr.bf16.mxu0 0
    %272 = vmatpush1.bf16.msra.mxu0 0
    %273 = vmatprep.subr.bf16.mxu0 0
    %274 = vmatpush1.bf16.msra.mxu0 0
    %275 = vmatprep.subr.bf16.mxu0 0
    %276 = vmatpush1.bf16.msra.mxu0 0
    %277 = vmatprep.subr.bf16.mxu0 0
    %278 = vmatpush1.bf16.msra.mxu0 0
    %279 = vmatprep.subr.bf16.mxu0 0
    %280 = vmatpush1.bf16.msra.mxu0 0
    %281 = vmatprep.subr.bf16.mxu0 0
    %282 = vmatpush1.bf16.msra.mxu0 0
    %283 = vmatprep.subr.bf16.mxu0 0
    %284 = vmatpush1.bf16.msra.mxu0 0
    %285 = vmatprep.mubr.bf16.mxu0 0
    %286 = vmatmul.mubr.bf16.gmra.mrb[0].mxu0 %v60
    %v287 = vpop.f32.mrb[0].mxu0
    %v288 = vadd.f32 0.0, %v287
    %v289 = vpop.f32.mrb[0].mxu0
    %v290 = vadd.f32 0.0, %v289
    %v291 = vpop.f32.mrb[0].mxu0
    %v292 = vpop.f32.mrb[0].mxu0
    %293 = vdwg.mxu0
    %294 = vmatprep.subr.bf16.mxu0 %v192
    %295 = vmatpush1.bf16.msra.mxu0 %v191
    %296 = vmatprep.subr.bf16.mxu0 %v196
    %297 = vmatpush1.bf16.msra.mxu0 %v195
    %298 = vmatprep.subr.bf16.mxu0 %v200
    %299 = vmatpush1.bf16.msra.mxu0 %v199
    %300 = vmatprep.subr.bf16.mxu0 %v204
    %301 = vmatpush1.bf16.msra.mxu0 %v203
    %302 = vmatprep.subr.bf16.mxu0 %v208
    %303 = vmatpush1.bf16.msra.mxu0 %v207
    %304 = vmatprep.subr.bf16.mxu0 %v212
    %305 = vmatpush1.bf16.msra.mxu0 %v211
    %306 = vmatprep.subr.bf16.mxu0 %v216
    %307 = vmatpush1.bf16.msra.mxu0 %v215
    %308 = vmatprep.subr.bf16.mxu0 %v220
    %309 = vmatpush1.bf16.msra.mxu0 %v219
    %310 = vmatprep.subr.bf16.mxu0 0
    %311 = vmatpush1.bf16.msra.mxu0 0
    %312 = vmatprep.subr.bf16.mxu0 0
    %313 = vmatpush1.bf16.msra.mxu0 0
    %314 = vmatprep.subr.bf16.mxu0 0
    %315 = vmatpush1.bf16.msra.mxu0 0
    %316 = vmatprep.subr.bf16.mxu0 0
    %317 = vmatpush1.bf16.msra.mxu0 0
    %318 = vmatprep.subr.bf16.mxu0 0
    %319 = vmatpush1.bf16.msra.mxu0 0
    %320 = vmatprep.subr.bf16.mxu0 0
    %321 = vmatpush1.bf16.msra.mxu0 0
    %322 = vmatprep.subr.bf16.mxu0 0
    %323 = vmatpush1.bf16.msra.mxu0 0
    %324 = vmatprep.subr.bf16.mxu0 0
    %325 = vmatpush1.bf16.msra.mxu0 0
    %326 = vmatprep.mubr.bf16.mxu0 0
    %327 = vmatmul.mubr.bf16.gmra.mrb[0].mxu0 %v60
    %v328 = vpop.f32.mrb[0].mxu0
    %v329 = vadd.f32 0.0, %v328
    %v330 = vpop.f32.mrb[0].mxu0
    %v331 = vadd.f32 0.0, %v330
    %v332 = vpop.f32.mrb[0].mxu0
    %v333 = vpop.f32.mrb[0].mxu0
    %334 = vdwg.mxu0
    %v335 = vmax.f32 %v288, -30.0
    %v336 = vmax.f32 %v290, -30.0
    %v337 = vsub.f32 0.0, %v335
    %v338 = vsub.f32 0.0, %v336
    %v339 = vmul.f32 %v337, 1.442695
    %v340 = vpow.pop %v339
    %v341 = vmul.f32 %v338, 1.442695
    %v342 = vpow.pop %v341
    %v343 = vadd.f32 %v340, 1.0
    %v344 = vadd.f32 %v342, 1.0
    %v345 = vrcp.pop %v343
    %v346 = vrcp.pop %v344
    %v347 = vmul.f32 %v288, %v345
    %v348 = vmul.f32 %v290, %v346
    %v349 = vmul.f32 %v347, %v329
    %v350 = vmul.f32 %v348, %v331
    %v351 = vld [vmem:[#allocation2] sm:$0xff]
    %v352 = vpack.c.bf16 %v349, %v349
    %v353 = vpack.c.bf16 %v350, %v350
    %v354 = vld [vmem:[#allocation8] sm:$0xf]
    %v355 = vld [vmem:[#allocation8 + $0x4] sm:$0xf]
    %v356 = vld [vmem:[#allocation8 + $0x8] sm:$0xf]
    %v357 = vld [vmem:[#allocation8 + $0xc] sm:$0xf]
    %v358 = vld [vmem:[#allocation8 + $0x10] sm:$0xf]
    %v359 = vld [vmem:[#allocation8 + $0x14] sm:$0xf]
    %v360 = vld [vmem:[#allocation8 + $0x18] sm:$0xf]
    %v361 = vld [vmem:[#allocation8 + $0x1c] sm:$0xf]
    %v362 = vld [vmem:[#allocation8 + $0x20] sm:$0xf]
    %v363 = vld [vmem:[#allocation8 + $0x24] sm:$0xf]
    %v364 = vld [vmem:[#allocation8 + $0x28] sm:$0xf]
    %v365 = vld [vmem:[#allocation8 + $0x2c] sm:$0xf]
    %v366 = vld [vmem:[#allocation8 + $0x30] sm:$0xf]
    %v367 = vld [vmem:[#allocation8 + $0x34] sm:$0xf]
    %v368 = vld [vmem:[#allocation8 + $0x38] sm:$0xf]
    %v369 = vld [vmem:[#allocation8 + $0x3c] sm:$0xf]
    %v370 = vld [vmem:[#allocation8 + $0x40] sm:$0xf]
    %v371 = vld [vmem:[#allocation8 + $0x44] sm:$0xf]
    %v372 = vld [vmem:[#allocation8 + $0x48] sm:$0xf]
    %v373 = vld [vmem:[#allocation8 + $0x4c] sm:$0xf]
    %v374 = vld [vmem:[#allocation8 + $0x50] sm:$0xf]
    %v375 = vld [vmem:[#allocation8 + $0x54] sm:$0xf]
    %v376 = vld [vmem:[#allocation8 + $0x58] sm:$0xf]
    %v377 = vld [vmem:[#allocation8 + $0x5c] sm:$0xf]
    %v378 = vld [vmem:[#allocation8 + $0x60] sm:$0xf]
    %v379 = vld [vmem:[#allocation8 + $0x64] sm:$0xf]
    %v380 = vld [vmem:[#allocation8 + $0x68] sm:$0xf]
    %v381 = vld [vmem:[#allocation8 + $0x6c] sm:$0xf]
    %v382 = vld [vmem:[#allocation8 + $0x70] sm:$0xf]
    %v383 = vld [vmem:[#allocation8 + $0x74] sm:$0xf]
    %v384 = vld [vmem:[#allocation8 + $0x78] sm:$0xf]
    %v385 = vld [vmem:[#allocation8 + $0x7c] sm:$0xf]
    %v418 = vunpack.c.l.b16 %v354
    %v419 = vunpack.c.l.b16 %v355
    %v420 = vunpack.c.l.b16 %v356
    %v421 = vunpack.c.l.b16 %v357
    %v422 = vunpack.c.l.b16 %v358
    %v423 = vunpack.c.l.b16 %v359
    %v424 = vunpack.c.l.b16 %v360
    %v425 = vunpack.c.l.b16 %v361
    %v426 = vunpack.c.l.b16 %v362
    %v427 = vunpack.c.l.b16 %v363
    %v428 = vunpack.c.l.b16 %v364
    %v429 = vunpack.c.l.b16 %v365
    %v430 = vunpack.c.l.b16 %v366
    %v431 = vunpack.c.l.b16 %v367
    %v432 = vunpack.c.l.b16 %v368
    %v433 = vunpack.c.l.b16 %v369
    %v434 = vunpack.c.l.b16 %v370
    %v435 = vunpack.c.l.b16 %v371
    %v436 = vunpack.c.l.b16 %v372
    %v437 = vunpack.c.l.b16 %v373
    %v438 = vunpack.c.l.b16 %v374
    %v439 = vunpack.c.l.b16 %v375
    %v440 = vunpack.c.l.b16 %v376
    %v441 = vunpack.c.l.b16 %v377
    %v442 = vunpack.c.l.b16 %v378
    %v443 = vunpack.c.l.b16 %v379
    %v444 = vunpack.c.l.b16 %v380
    %v445 = vunpack.c.l.b16 %v381
    %v446 = vunpack.c.l.b16 %v382
    %v447 = vunpack.c.l.b16 %v383
    %v448 = vunpack.c.l.b16 %v384
    %v449 = vunpack.c.l.b16 %v385
    %v450 = vpack.c.b16 %v419, %v418
    %v451 = vpack.c.b16 %v421, %v420
    %v452 = vpack.c.b16 %v423, %v422
    %v453 = vpack.c.b16 %v425, %v424
    %v454 = vpack.c.b16 %v427, %v426
    %v455 = vpack.c.b16 %v429, %v428
    %v456 = vpack.c.b16 %v431, %v430
    %v457 = vpack.c.b16 %v433, %v432
    %v458 = vpack.c.b16 %v435, %v434
    %v459 = vpack.c.b16 %v437, %v436
    %v460 = vpack.c.b16 %v439, %v438
    %v461 = vpack.c.b16 %v441, %v440
    %v462 = vpack.c.b16 %v443, %v442
    %v463 = vpack.c.b16 %v445, %v444
    %v464 = vpack.c.b16 %v447, %v446
    %v465 = vpack.c.b16 %v449, %v448
    %482 = vmatprep.subr.bf16.mxu0 0
    %483 = vmatpush1.bf16.msra.mxu0 %v450
    %484 = vmatprep.subr.bf16.mxu0 0
    %485 = vmatpush1.bf16.msra.mxu0 %v451
    %486 = vmatprep.subr.bf16.mxu0 0
    %487 = vmatpush1.bf16.msra.mxu0 %v452
    %488 = vmatprep.subr.bf16.mxu0 0
    %489 = vmatpush1.bf16.msra.mxu0 %v453
    %490 = vmatprep.subr.bf16.mxu0 0
    %491 = vmatpush1.bf16.msra.mxu0 %v454
    %492 = vmatprep.subr.bf16.mxu0 0
    %493 = vmatpush1.bf16.msra.mxu0 %v455
    %494 = vmatprep.subr.bf16.mxu0 0
    %495 = vmatpush1.bf16.msra.mxu0 %v456
    %496 = vmatprep.subr.bf16.mxu0 0
    %497 = vmatpush1.bf16.msra.mxu0 %v457
    %498 = vmatprep.subr.bf16.mxu0 0
    %499 = vmatpush1.bf16.msra.mxu0 %v458
    %500 = vmatprep.subr.bf16.mxu0 0
    %501 = vmatpush1.bf16.msra.mxu0 %v459
    %502 = vmatprep.subr.bf16.mxu0 0
    %503 = vmatpush1.bf16.msra.mxu0 %v460
    %504 = vmatprep.subr.bf16.mxu0 0
    %505 = vmatpush1.bf16.msra.mxu0 %v461
    %506 = vmatprep.subr.bf16.mxu0 0
    %507 = vmatpush1.bf16.msra.mxu0 %v462
    %508 = vmatprep.subr.bf16.mxu0 0
    %509 = vmatpush1.bf16.msra.mxu0 %v463
    %510 = vmatprep.subr.bf16.mxu0 0
    %511 = vmatpush1.bf16.msra.mxu0 %v464
    %512 = vmatprep.subr.bf16.mxu0 0
    %513 = vmatpush1.bf16.msra.mxu0 %v465
    %514 = vmatprep.mubr.bf16.mxu0 %v353
    %515 = vmatmul.mubr.bf16.gmra.mrb[0].mxu0 %v352
    %v516 = vpop.f32.mrb[0].mxu0
    %v517 = vadd.f32 0.0, %v516
    %v518 = vpop.f32.mrb[0].mxu0
    %v519 = vpop.f32.mrb[0].mxu0
    %v520 = vpop.f32.mrb[0].mxu0
    %521 = vdwg.mxu0
    %v522 = vadd.f32 %v351, %v517
    %523 = vst [vmem:[#allocation2] sm:$0xff] %v522
    // Predicated region
    $region30: #{tpu_custom_call.1} parent=1 // pred_check
      %p524 = pneg %p55
    $region31: #{tpu_custom_call.1} parent=1 // pred_check_branch
      %526 = sbr.rel (%p524) target = $region33
    $region32: #{tpu_custom_call.1} parent=1 // pred_region
      %v527 = vld [vmem:[#allocation2] sm:$0xff]
      %v528 = vpack.c.bf16 %v527, %v527
      %529 = vst [vmem:[#allocation9] sm:$0xf] %v528
    $region33: #{tpu_custom_call.1} parent=1 // pred_fallthru
      _
    // Predicated region
    $region34: #{tpu_custom_call.1} parent=1 // pred_check
      _
    $region35: #{tpu_custom_call.1} parent=1 // pred_check_branch
      %531 = sbr.rel (0) target = $region37
    $region36: #{tpu_custom_call.1} parent=1 // pred_region
      %s533 = ssub.s32 64, 64
      %534 = vsyncadd [#allocation5], %s533
      %s536 = sshll.u32 [#allocation9], 4
      %s537 = int_to_ptr.vmem [resolvable:$true] %s536
      %539 = dma.vmem_to_hbm [thread:$0]  %s537, 64, %s3, [#allocation5]
    $region37: #{tpu_custom_call.1} parent=1 // pred_fallthru
      _
    // Predicated region
    $region38: #{tpu_custom_call.1} parent=1 // pred_check
      _
    $region39: #{tpu_custom_call.1} parent=1 // pred_check_branch
      %541 = sbr.rel (0) target = $region41
    $region40: #{tpu_custom_call.1} parent=1 // pred_region
      %542 = dma.done [#allocation5], 64
    $region41: #{tpu_custom_call.1} parent=1 // pred_fallthru
      _
    %543 = vsyncpa [#allocation4], 1
    %544 = vsyncpa [#allocation7], 1
    %545 = vsyncpa [#allocation5], 1

</llo_original>
